<compile_context>
chip_gen: v7x
topology: tpu7x:2x2x1
jax: 0.10.0
libtpu: 0.0.40
codegen_flags: <defaults>
</compile_context>

<pallas_src>
import jax
import jax.numpy as jnp
from jax.experimental import pallas as pl
from jax.experimental.pallas import tpu as pltpu

VOCAB = 100
EMB_DIM = 10
OUT_DIM = 1


def _gather_kernel(idx_ref, v_ref, o_ref):
    # idx_ref: (1, TN) int32 token ids (lane-dense)
    # v_ref:   (1, VOCAB) f32 folded lookup vector  v = (E1+E2) @ W^T + b
    # o_ref:   (1, TN) f32 outputs (lane-dense)
    idx = idx_ref[...]                                                 # (1, TN)
    vocab_col = jax.lax.broadcasted_iota(jnp.int32, (VOCAB, 1), 0)     # (V, 1)
    # Broadcast compare builds the one-hot without materializing a 2D iota.
    onehot = (vocab_col == idx).astype(jnp.float32)                    # (V, TN)
    # Single MXU matmul: (1, V) @ (V, TN) -> (1, TN); unmasked lane-dense store.
    o_ref[...] = jnp.dot(v_ref[...], onehot,
                         preferred_element_type=jnp.float32)


def _choose_token_tile(n, tile_n):
    """Pick a lane-aligned token tile.

    n <= 128       -> single full-dim block (block last dim == array last dim).
    otherwise      -> multiple of 128, capped at tile_n and at ~n/2 so the
                      parallel grid axis has >= 2 steps (v7x megacore).
    """
    if n <= 128:
        return n
    half = (n // 2) // 128 * 128
    return max(128, min(tile_n, half))


def embed_multiple_forward(x, embed1, embed2, lin_w, lin_b, tile_n=8192):
    """x: (B, S) integer indices. Returns (B, S, 1) float32."""
    B, S = x.shape
    N = B * S

    # Fold Embed1 + Embed2 + Linear(10->1) + bias into one (VOCAB,) lookup.
    # Exact because each one-hot column has exactly one 1 (bias fold valid).
    v = (embed1 + embed2) @ lin_w.T + lin_b                  # (VOCAB, 1)
    v_row = v.reshape(1, VOCAB).astype(jnp.float32)          # (1, VOCAB)

    # Token axis becomes the lane axis; no padding / tail slice — rely on
    # Pallas partial-final-block handling for the last tile.
    idx = x.reshape(1, N).astype(jnp.int32)

    tn = _choose_token_tile(N, tile_n)
    grid = (pl.cdiv(N, tn),)

    out = pl.pallas_call(
        _gather_kernel,
        out_shape=jax.ShapeDtypeStruct((1, N), jnp.float32),
        grid_spec=pltpu.PrefetchScalarGridSpec(
            num_scalar_prefetch=0,
            grid=grid,
            in_specs=[
                pl.BlockSpec((1, tn), lambda i: (0, i)),      # token ids
                pl.BlockSpec((1, VOCAB), lambda i: (0, 0)),   # folded table
            ],
            out_specs=pl.BlockSpec((1, tn), lambda i: (0, i)),
        ),
        compiler_params=pltpu.CompilerParams(
            dimension_semantics=("parallel",)),
    )(idx, v_row)

    return out.reshape(B, S, OUT_DIM)


def init_params(key):
    k1, k2, k3, k4 = jax.random.split(key, 4)
    # torch.nn.Embedding default init: N(0, 1)
    embed1 = jax.random.normal(k1, (VOCAB, EMB_DIM), dtype=jnp.float32)
    embed2 = jax.random.normal(k2, (VOCAB, EMB_DIM), dtype=jnp.float32)
    # torch.nn.Linear default init: U(-1/sqrt(fan_in), 1/sqrt(fan_in))
    bound = 1.0 / (EMB_DIM ** 0.5)
    lin_w = jax.random.uniform(k3, (OUT_DIM, EMB_DIM), dtype=jnp.float32,
                               minval=-bound, maxval=bound)
    lin_b = jax.random.uniform(k4, (OUT_DIM,), dtype=jnp.float32,
                               minval=-bound, maxval=bound)
    return embed1, embed2, lin_w, lin_b


if __name__ == "__main__":
    key = jax.random.PRNGKey(0)
    pkey, xkey, xkey2 = jax.random.split(key, 3)
    embed1, embed2, lin_w, lin_b = init_params(pkey)

    # Small shape consistent with the module (token ids in [0, 100)).
    B, S = 2, 8
    x = jax.random.randint(xkey, (B, S), 0, VOCAB, dtype=jnp.int32)

    out = embed_multiple_forward(x, embed1, embed2, lin_w, lin_b)
    jax.block_until_ready(out)

    # Reference: plain JAX version of the PyTorch module.
    ref = (embed1[x] + embed2[x]) @ lin_w.T + lin_b
    assert out.shape == (B, S, 1)
    assert jnp.allclose(out, ref, atol=1e-5, rtol=1e-5)

    # Also exercise a multi-tile case with a partial final block
    # (N = 2*333 = 666 -> tn = 256, grid = 3, last block partially valid).
    B2, S2 = 2, 333
    x2 = jax.random.randint(xkey2, (B2, S2), 0, VOCAB, dtype=jnp.int32)
    out2 = embed_multiple_forward(x2, embed1, embed2, lin_w, lin_b)
    jax.block_until_ready(out2)
    ref2 = (embed1[x2] + embed2[x2]) @ lin_w.T + lin_b
    assert out2.shape == (B2, S2, 1)
    assert jnp.allclose(out2, ref2, atol=1e-5, rtol=1e-5)

    print("KERNEL_OK")
</pallas_src>

<mosaic_0001>
module attributes {stable_mosaic.version = 11 : i64} {
  func.func @_gather_kernel(%arg0: i32, %arg1: memref<1x16xi32, #tpu.memory_space<vmem>>, %arg2: memref<1x100xf32, #tpu.memory_space<vmem>>, %arg3: memref<1x16xf32, #tpu.memory_space<vmem>>) attributes {dimension_semantics = [#tpu.dimension_semantics<parallel>], iteration_bounds = array<i64: 1>, scalar_prefetch = 0 : i64, scratch_operands = 0 : i64, tpu.core_type = #tpu.core_type<tc>, window_params = [{transform_indices = @transform_0, window_bounds = array<i64: 1, 16>}, {pipeline_mode = #tpu.pipeline_mode<synchronous>, transform_indices = @transform_1, window_bounds = array<i64: 1, 100>}, {transform_indices = @transform_2, window_bounds = array<i64: 1, 16>}]} {
    %c0 = arith.constant 0 : index
    %c0_0 = arith.constant 0 : index
    %0 = vector.load %arg1[%c0, %c0_0] : memref<1x16xi32, #tpu.memory_space<vmem>>, vector<1x16xi32>
    %1 = tpu.iota {dimensions = array<i32: 0>} : vector<100x1xi32>
    %2 = vector.broadcast %1 : vector<100x1xi32> to vector<100x16xi32>
    %3 = vector.broadcast %0 : vector<1x16xi32> to vector<100x16xi32>
    %4 = arith.cmpi eq, %2, %3 : vector<100x16xi32>
    %5 = arith.extui %4 : vector<100x16xi1> to vector<100x16xi32>
    %6 = arith.sitofp %5 : vector<100x16xi32> to vector<100x16xf32>
    %c0_1 = arith.constant 0 : index
    %c0_2 = arith.constant 0 : index
    %7 = vector.load %arg2[%c0_1, %c0_2] : memref<1x100xf32, #tpu.memory_space<vmem>>, vector<1x100xf32>
    %cst = arith.constant dense<0.000000e+00> : vector<1x16xf32>
    %8 = tpu.matmul %7, %6, %cst {dimension_numbers = #tpu.dot_dimension_numbers<[1], [0], [0], [1], [0, 0, 1, 1], [], []>} : vector<1x100xf32>, vector<100x16xf32>, vector<1x16xf32> -> vector<1x16xf32>
    %c0_3 = arith.constant 0 : index
    %c0_4 = arith.constant 0 : index
    %9 = vector.load %arg3[%c0_3, %c0_4] : memref<1x16xf32, #tpu.memory_space<vmem>>, vector<1x16xf32>
    tpu.vector_store %arg3[%c0_3, %c0_4], %8 {strides = array<i32>} : memref<1x16xf32, #tpu.memory_space<vmem>>, vector<1x16xf32>,
    return
  }
  func.func @transform_0(%arg0: i32) -> (i32, i32) {
    %c0_i32 = arith.constant 0 : i32
    %c0_i32_0 = arith.constant 0 : i32
    return %c0_i32, %arg0 : i32, i32
  }
  func.func @transform_1(%arg0: i32) -> (i32, i32) {
    %c0_i32 = arith.constant 0 : i32
    %c0_i32_0 = arith.constant 0 : i32
    %c0_i32_1 = arith.constant 0 : i32
    return %c0_i32, %c0_i32_0 : i32, i32
  }
  func.func @transform_2(%arg0: i32) -> (i32, i32) {
    %c0_i32 = arith.constant 0 : i32
    %c0_i32_0 = arith.constant 0 : i32
    return %c0_i32, %arg0 : i32, i32
  }
}

</mosaic_0001>

<llo_original>
// kernel: tpu_custom_call.1
$region0: #{tpu_custom_call.1}
  #allocation0 [shape = 'u32[]', space=smem, size = 0x4, offset = 0x4, fixed_abs, tag = 'smem constant byte address 0x4 - core index']
  #allocation1 [shape = 'u32[144,128]{1,0:T(1,128)}', space=vmem, size = 0x12000, scoped, tag = 'internal scratch']
  %s0 = inlined_call_operand.hbm [shape: s32[1,16], index: 0, kind: input, shape index: {}]
  %s1 = inlined_call_operand.vmem [shape: f32[1,100], index: 1, kind: input, shape index: {}]
  %s2 = inlined_call_operand.hbm [shape: f32[1,16], index: 2, kind: output, shape index: {}]
  %s3 = sld [smem:[#allocation0]]
  $region22: #{tpu_custom_call.1} parent=0
    _
  %s5 = ssub.s32 1, %s3
  %s6 = scalar_select 0, %s5, %s3
  $region1: #{tpu_custom_call.1} parent=0
    #allocation2 [shape = 'u8[512]{0}', space=vmem, size = 0x400, scoped, tag = 'input window, operand 0, single buffered']
    #allocation3 [shape = 's32[1]{0}', space=sflag, size = 0x4, scoped, tag = 'scoped memory for tpu_custom_call.1']
    #allocation4 [shape = 's32[1]{0}', space=sflag, size = 0x4, scoped, tag = 'scoped memory for tpu_custom_call.1']
    #allocation5 [shape = 'u8[512]{0}', space=vmem, size = 0x400, scoped, tag = 'output window, operand 0, single buffered']
    %7 = vsyncpa [#allocation3], 0
    %8 = vsyncpa [#allocation4], 0
    // Predicated region
    $region2: #{tpu_custom_call.1} parent=1 // pred_check
      _
    $region3: #{tpu_custom_call.1} parent=1 // pred_check_branch
      %10 = sbr.rel (0) target = $region5
    $region4: #{tpu_custom_call.1} parent=1 // pred_region
      %s12 = ssub.s32 16, 16
      %13 = vsyncadd [#allocation3], %s12
      %s15 = sshll.u32 [#allocation2], 4
      %s16 = int_to_ptr.vmem [resolvable:$true] %s15
      %18 = dma.hbm_to_vmem [thread:$0]  %s0, 16, %s16, [#allocation3]
    $region5: #{tpu_custom_call.1} parent=1 // pred_fallthru
      _
    // Predicated region
    $region6: #{tpu_custom_call.1} parent=1 // pred_check
      _
    $region7: #{tpu_custom_call.1} parent=1 // pred_check_branch
      %20 = sbr.rel (0) target = $region9
    $region8: #{tpu_custom_call.1} parent=1 // pred_region
      _
    $region9: #{tpu_custom_call.1} parent=1 // pred_fallthru
      _
    // Predicated region
    $region10: #{tpu_custom_call.1} parent=1 // pred_check
      _
    $region11: #{tpu_custom_call.1} parent=1 // pred_check_branch
      %22 = sbr.rel (0) target = $region13
    $region12: #{tpu_custom_call.1} parent=1 // pred_region
      %23 = dma.done [#allocation3], 16
    $region13: #{tpu_custom_call.1} parent=1 // pred_fallthru
      _
    %v24 = vld [vmem:[#allocation2] sm:$0x1]
    %v25 = vlaneseq
    %v26 = vshrl.u32 %v25, 7
    %v27 = vadd.s32 %v26, 8
    %v28 = vadd.s32 %v26, 16
    %v29 = vadd.s32 %v26, 24
    %v30 = vadd.s32 %v26, 32
    %v31 = vadd.s32 %v26, 40
    %v32 = vadd.s32 %v26, 48
    %v33 = vadd.s32 %v26, 56
    %v34 = vadd.s32 %v26, 64
    %v35 = vadd.s32 %v26, 72
    %v36 = vadd.s32 %v26, 80
    %v37 = vadd.s32 %v26, 88
    %v38 = vadd.s32 %v26, 96
    %v39 = vlaneseq
    %v40 = vshrl.u32 %v39, 7
    %v41 = vsub.s32 0, %v40
    %v42 = vrot.slane %v24, %v41
    %vm43 = vcmp.eq.s32.totalorder %v26, %v42
    %vm44 = vcmp.eq.s32.totalorder %v27, %v42
    %vm45 = vcmp.eq.s32.totalorder %v28, %v42
    %vm46 = vcmp.eq.s32.totalorder %v29, %v42
    %vm47 = vcmp.eq.s32.totalorder %v30, %v42
    %vm48 = vcmp.eq.s32.totalorder %v31, %v42
    %vm49 = vcmp.eq.s32.totalorder %v32, %v42
    %vm50 = vcmp.eq.s32.totalorder %v33, %v42
    %vm51 = vcmp.eq.s32.totalorder %v34, %v42
    %vm52 = vcmp.eq.s32.totalorder %v35, %v42
    %vm53 = vcmp.eq.s32.totalorder %v36, %v42
    %vm54 = vcmp.eq.s32.totalorder %v37, %v42
    %vm55 = vcmp.eq.s32.totalorder %v38, %v42
    %v56 = vsel %vm43, 1, 0
    %v57 = vsel %vm44, 1, 0
    %v58 = vsel %vm45, 1, 0
    %v59 = vsel %vm46, 1, 0
    %v60 = vsel %vm47, 1, 0
    %v61 = vsel %vm48, 1, 0
    %v62 = vsel %vm49, 1, 0
    %v63 = vsel %vm50, 1, 0
    %v64 = vsel %vm51, 1, 0
    %v65 = vsel %vm52, 1, 0
    %v66 = vsel %vm53, 1, 0
    %v67 = vsel %vm54, 1, 0
    %v68 = vsel %vm55, 1, 0
    %v69 = vcvt.s32.f32 %v56
    %v70 = vcvt.s32.f32 %v57
    %v71 = vcvt.s32.f32 %v58
    %v72 = vcvt.s32.f32 %v59
    %v73 = vcvt.s32.f32 %v60
    %v74 = vcvt.s32.f32 %v61
    %v75 = vcvt.s32.f32 %v62
    %v76 = vcvt.s32.f32 %v63
    %v77 = vcvt.s32.f32 %v64
    %v78 = vcvt.s32.f32 %v65
    %v79 = vcvt.s32.f32 %v66
    %v80 = vcvt.s32.f32 %v67
    %v81 = vcvt.s32.f32 %v68
    %v82 = vld [vmem:[%s1] sm:$0x1]
    %vm83 = vcmask 818176
    %v85 = vsel %vm83, %v82, 0
    %vm87 = vcmask 1043456
    %v89 = vsel %vm87, %v81, 0
    %91 = vmatprep.subr.mxu0 0.0
    %92 = vmatpush1.msra.mxu0 %v69
    %93 = vmatprep.subr.mxu0 0.0
    %94 = vmatpush1.msra.mxu0 %v70
    %95 = vmatprep.subr.mxu0 0.0
    %96 = vmatpush1.msra.mxu0 %v71
    %97 = vmatprep.subr.mxu0 0.0
    %98 = vmatpush1.msra.mxu0 %v72
    %99 = vmatprep.subr.mxu0 0.0
    %100 = vmatpush1.msra.mxu0 %v73
    %101 = vmatprep.subr.mxu0 0.0
    %102 = vmatpush1.msra.mxu0 %v74
    %103 = vmatprep.subr.mxu0 0.0
    %104 = vmatpush1.msra.mxu0 %v75
    %105 = vmatprep.subr.mxu0 0.0
    %106 = vmatpush1.msra.mxu0 %v76
    %107 = vmatprep.subr.mxu0 0.0
    %108 = vmatpush1.msra.mxu0 %v77
    %109 = vmatprep.subr.mxu0 0.0
    %110 = vmatpush1.msra.mxu0 %v78
    %111 = vmatprep.subr.mxu0 0.0
    %112 = vmatpush1.msra.mxu0 %v79
    %113 = vmatprep.subr.mxu0 0.0
    %114 = vmatpush1.msra.mxu0 %v80
    %115 = vmatprep.subr.mxu0 0.0
    %116 = vmatpush1.msra.mxu0 %v89
    %117 = vmatprep.subr.mxu0 0.0
    %118 = vmatpush1.msra.mxu0 0.0
    %119 = vmatprep.subr.mxu0 0.0
    %120 = vmatpush1.msra.mxu0 0.0
    %121 = vmatprep.subr.mxu0 0.0
    %122 = vmatpush1.msra.mxu0 0.0
    %123 = vmatprep.subr.mxu0 0.0
    %124 = vmatpush1.msra.mxu0 0.0
    %125 = vmatprep.subr.mxu0 0.0
    %126 = vmatpush1.msra.mxu0 0.0
    %127 = vmatprep.subr.mxu0 0.0
    %128 = vmatpush1.msra.mxu0 0.0
    %129 = vmatprep.subr.mxu0 0.0
    %130 = vmatpush1.msra.mxu0 0.0
    %131 = vmatprep.subr.mxu0 0.0
    %132 = vmatpush1.msra.mxu0 0.0
    %133 = vmatprep.subr.mxu0 0.0
    %134 = vmatpush1.msra.mxu0 0.0
    %135 = vmatprep.subr.mxu0 0.0
    %136 = vmatpush1.msra.mxu0 0.0
    %137 = vmatprep.subr.mxu0 0.0
    %138 = vmatpush1.msra.mxu0 0.0
    %139 = vmatprep.subr.mxu0 0.0
    %140 = vmatpush1.msra.mxu0 0.0
    %141 = vmatprep.subr.mxu0 0.0
    %142 = vmatpush1.msra.mxu0 0.0
    %143 = vmatprep.subr.mxu0 0.0
    %144 = vmatpush1.msra.mxu0 0.0
    %145 = vmatprep.subr.mxu0 0.0
    %146 = vmatpush1.msra.mxu0 0.0
    %147 = vmatprep.subr.mxu0 0.0
    %148 = vmatpush1.msra.mxu0 0.0
    %149 = vmatprep.subr.mxu0 0.0
    %150 = vmatpush1.msra.mxu0 0.0
    %151 = vmatprep.subr.mxu0 0.0
    %152 = vmatpush1.msra.mxu0 0.0
    %153 = vmatprep.subr.mxu0 0.0
    %154 = vmatpush1.msra.mxu0 0.0
    %155 = vmatprep.mubr.f32.mxu0 0.0
    %156 = vmatmul.mubr.f32.gmra.mrb[0].mxu0 %v85
    %v157 = vpop.f32.mrb[0].mxu0
    %v158 = vadd.f32 0.0, %v157
    %v159 = vpop.f32.mrb[0].mxu0
    %160 = vdwg.mxu0
    %vm161 = vcmask 122880
    %162 = vst.msk [vmem:[#allocation5] sm:$0x1] %vm161, %v158
    // Predicated region
    $region14: #{tpu_custom_call.1} parent=1 // pred_check
      _
    $region15: #{tpu_custom_call.1} parent=1 // pred_check_branch
      %164 = sbr.rel (0) target = $region17
    $region16: #{tpu_custom_call.1} parent=1 // pred_region
      %s166 = ssub.s32 16, 16
      %167 = vsyncadd [#allocation4], %s166
      %s169 = sshll.u32 [#allocation5], 4
      %s170 = int_to_ptr.vmem [resolvable:$true] %s169
      %172 = dma.vmem_to_hbm [thread:$0]  %s170, 16, %s2, [#allocation4]
    $region17: #{tpu_custom_call.1} parent=1 // pred_fallthru
      _
    // Predicated region
    $region18: #{tpu_custom_call.1} parent=1 // pred_check
      _
    $region19: #{tpu_custom_call.1} parent=1 // pred_check_branch
      %174 = sbr.rel (0) target = $region21
    $region20: #{tpu_custom_call.1} parent=1 // pred_region
      %175 = dma.done [#allocation4], 16
    $region21: #{tpu_custom_call.1} parent=1 // pred_fallthru
      _
    %176 = vsyncpa [#allocation3], 1
    %177 = vsyncpa [#allocation4], 1

</llo_original>
